<compile_context>
chip_gen: v5e
topology: v5e:2x2
jax: 0.10.0
libtpu: 0.0.40
codegen_flags: <defaults>
</compile_context>

<pallas_src>
import jax
import jax.numpy as jnp
from jax.experimental import pallas as pl
from jax.experimental.pallas import tpu as pltpu

LANE = 128


def _round_up(v, m):
    return ((v + m - 1) // m) * m


def mlp_kernel(x_ref, w1_ref, b1_ref, w2_ref, b2_ref, o_ref):
    # fc1 on the MXU: bf16 operands, f32 accumulation.
    h = jnp.dot(x_ref[...], w1_ref[...], preferred_element_type=jnp.float32)
    # Bias + ReLU in f32 on the VPU (single broadcast read of b1).
    h = jnp.maximum(h + b1_ref[...], 0.0)
    # fc2 against the 128-lane-padded weight so the output store is lane-dense.
    out = jnp.dot(h, w2_ref[...], preferred_element_type=jnp.float32)
    o_ref[...] = (out + b2_ref[...]).astype(o_ref.dtype)


def net_forward(x, w1, b1, w2, b2, *, tile_b=512):
    """Pallas-backed forward pass equivalent to Net.forward.

    x : [B, input_size]        float32
    w1: [input_size, hidden]   float32   (transpose of torch fc1.weight)
    b1: [hidden]               float32
    w2: [hidden, num_classes]  float32   (transpose of torch fc2.weight)
    b2: [num_classes]          float32
    returns [B, num_classes]   float32
    """
    B, in_size = x.shape
    hidden = w1.shape[1]
    num_classes = w2.shape[1]

    # bf16 the big HBM streams fed to the first matmul (memory-bound kernel).
    x_bf = x.astype(jnp.bfloat16)
    w1_bf = w1.astype(jnp.bfloat16)

    # Lane-dense output: pad the class dim to a multiple of 128.
    n_pad = _round_up(max(num_classes, 1), LANE)
    w2_p = jnp.zeros((hidden, n_pad), jnp.float32).at[:, :num_classes].set(
        w2.astype(jnp.float32))
    b2_p = jnp.zeros((1, n_pad), jnp.float32).at[:, :num_classes].set(
        b2.reshape(1, num_classes).astype(jnp.float32))
    b1_r = b1.reshape(1, hidden).astype(jnp.float32)

    # Batch tiling: large tiles (up to tile_b rows), multiple of 16 for bf16 sublanes.
    tb = max(16, min(tile_b, _round_up(B, 16)))
    b_pad = _round_up(B, tb)
    if b_pad != B:
        x_bf = jnp.pad(x_bf, ((0, b_pad - B), (0, 0)))
    nb = b_pad // tb

    out_padded = pl.pallas_call(
        mlp_kernel,
        out_shape=jax.ShapeDtypeStruct((b_pad, n_pad), jnp.float32),
        grid=(nb,),
        in_specs=[
            pl.BlockSpec((tb, in_size), lambda i: (i, 0)),        # x: tiled over batch
            pl.BlockSpec((in_size, hidden), lambda i: (0, 0)),    # W1: VMEM-resident
            pl.BlockSpec((1, hidden), lambda i: (0, 0)),          # b1: VMEM-resident
            pl.BlockSpec((hidden, n_pad), lambda i: (0, 0)),      # W2 (padded): resident
            pl.BlockSpec((1, n_pad), lambda i: (0, 0)),           # b2 (padded): resident
        ],
        out_specs=pl.BlockSpec((tb, n_pad), lambda i: (i, 0)),
        compiler_params=pltpu.CompilerParams(
            dimension_semantics=("parallel",),      # shard batch tiles across TCs (v7x)
            vmem_limit_bytes=48 * 1024 * 1024,      # fits v7x's 64 MiB physical VMEM
        ),
    )(x_bf, w1_bf, b1_r, w2_p, b2_p)

    return out_padded[:B, :num_classes]


def init_params(key, input_size=10, hidden_size=30, num_classes=2):
    """Deterministic parameter init (Kaiming-uniform-ish, like torch Linear default)."""
    k1, k2, k3, k4 = jax.random.split(key, 4)
    bound1 = 1.0 / (input_size ** 0.5)
    bound2 = 1.0 / (hidden_size ** 0.5)
    # Stored as [in, out] (transposed vs. PyTorch's [out, in]).
    w1 = jax.random.uniform(k1, (input_size, hidden_size), jnp.float32, -bound1, bound1)
    b1 = jax.random.uniform(k2, (hidden_size,), jnp.float32, -bound1, bound1)
    w2 = jax.random.uniform(k3, (hidden_size, num_classes), jnp.float32, -bound2, bound2)
    b2 = jax.random.uniform(k4, (num_classes,), jnp.float32, -bound2, bound2)
    return w1, b1, w2, b2


if __name__ == "__main__":
    input_size, hidden_size, num_classes = 10, 30, 2
    batch = 8

    key = jax.random.PRNGKey(0)
    pkey, xkey = jax.random.split(key)
    w1, b1, w2, b2 = init_params(pkey, input_size, hidden_size, num_classes)
    x = jax.random.normal(xkey, (batch, input_size), jnp.float32)

    out = net_forward(x, w1, b1, w2, b2)
    out = jax.block_until_ready(out)
    assert out.shape == (batch, num_classes)

    # Reference with the same bf16 matmul-operand cast (tight tolerance) ...
    ref_h = jnp.maximum(
        jnp.dot(x.astype(jnp.bfloat16), w1.astype(jnp.bfloat16),
                preferred_element_type=jnp.float32) + b1.reshape(1, -1), 0.0)
    ref_bf = jnp.dot(ref_h, w2, preferred_element_type=jnp.float32) + b2.reshape(1, -1)
    assert jnp.allclose(out, ref_bf, atol=2e-3, rtol=2e-3)

    # ... and a pure-f32 sanity check (loose tolerance for the bf16 input cast).
    ref_f32 = jnp.maximum(x @ w1 + b1.reshape(1, -1), 0.0) @ w2 + b2.reshape(1, -1)
    assert jnp.allclose(out, ref_f32, atol=5e-2, rtol=5e-2)

    print("KERNEL_OK")
</pallas_src>

<mosaic_0001>
module attributes {stable_mosaic.version = 11 : i64} {
  func.func @mlp_kernel(%arg0: i32, %arg1: memref<16x10xbf16, #tpu.memory_space<vmem>>, %arg2: memref<10x30xbf16, #tpu.memory_space<vmem>>, %arg3: memref<1x30xf32, #tpu.memory_space<vmem>>, %arg4: memref<30x128xf32, #tpu.memory_space<vmem>>, %arg5: memref<1x128xf32, #tpu.memory_space<vmem>>, %arg6: memref<16x128xf32, #tpu.memory_space<vmem>>) attributes {dimension_semantics = [#tpu.dimension_semantics<parallel>], iteration_bounds = array<i64: 1>, scalar_prefetch = 0 : i64, scratch_operands = 0 : i64, tpu.core_type = #tpu.core_type<tc>, window_params = [{transform_indices = @transform_0, window_bounds = array<i64: 16, 10>}, {pipeline_mode = #tpu.pipeline_mode<synchronous>, transform_indices = @transform_1, window_bounds = array<i64: 10, 30>}, {pipeline_mode = #tpu.pipeline_mode<synchronous>, transform_indices = @transform_2, window_bounds = array<i64: 1, 30>}, {pipeline_mode = #tpu.pipeline_mode<synchronous>, transform_indices = @transform_3, window_bounds = array<i64: 30, 128>}, {pipeline_mode = #tpu.pipeline_mode<synchronous>, transform_indices = @transform_4, window_bounds = array<i64: 1, 128>}, {transform_indices = @transform_5, window_bounds = array<i64: 16, 128>}]} {
    %c0 = arith.constant 0 : index
    %c0_0 = arith.constant 0 : index
    %0 = vector.load %arg1[%c0, %c0_0] : memref<16x10xbf16, #tpu.memory_space<vmem>>, vector<16x10xbf16>
    %c0_1 = arith.constant 0 : index
    %c0_2 = arith.constant 0 : index
    %1 = vector.load %arg2[%c0_1, %c0_2] : memref<10x30xbf16, #tpu.memory_space<vmem>>, vector<10x30xbf16>
    %cst = arith.constant dense<0.000000e+00> : vector<16x30xf32>
    %2 = tpu.matmul %0, %1, %cst {dimension_numbers = #tpu.dot_dimension_numbers<[1], [0], [0], [1], [0, 0, 1, 1], [], []>} : vector<16x10xbf16>, vector<10x30xbf16>, vector<16x30xf32> -> vector<16x30xf32>
    %c0_3 = arith.constant 0 : index
    %c0_4 = arith.constant 0 : index
    %3 = vector.load %arg3[%c0_3, %c0_4] : memref<1x30xf32, #tpu.memory_space<vmem>>, vector<1x30xf32>
    %4 = vector.broadcast %3 : vector<1x30xf32> to vector<16x30xf32>
    %5 = arith.addf %2, %4 : vector<16x30xf32>
    %cst_5 = arith.constant 0.000000e+00 : f32
    %6 = vector.broadcast %cst_5 : f32 to vector<16x30xf32>
    %7 = arith.maximumf %5, %6 : vector<16x30xf32>
    %c0_6 = arith.constant 0 : index
    %c0_7 = arith.constant 0 : index
    %8 = vector.load %arg4[%c0_6, %c0_7] : memref<30x128xf32, #tpu.memory_space<vmem>>, vector<30x128xf32>
    %cst_8 = arith.constant dense<0.000000e+00> : vector<16x128xf32>
    %9 = tpu.matmul %7, %8, %cst_8 {dimension_numbers = #tpu.dot_dimension_numbers<[1], [0], [0], [1], [0, 0, 1, 1], [], []>} : vector<16x30xf32>, vector<30x128xf32>, vector<16x128xf32> -> vector<16x128xf32>
    %c0_9 = arith.constant 0 : index
    %c0_10 = arith.constant 0 : index
    %10 = vector.load %arg5[%c0_9, %c0_10] : memref<1x128xf32, #tpu.memory_space<vmem>>, vector<1x128xf32>
    %11 = vector.broadcast %10 : vector<1x128xf32> to vector<16x128xf32>
    %12 = arith.addf %9, %11 : vector<16x128xf32>
    %c0_11 = arith.constant 0 : index
    %c0_12 = arith.constant 0 : index
    %13 = vector.load %arg6[%c0_11, %c0_12] : memref<16x128xf32, #tpu.memory_space<vmem>>, vector<16x128xf32>
    tpu.vector_store %arg6[%c0_11, %c0_12], %12 {strides = array<i32>} : memref<16x128xf32, #tpu.memory_space<vmem>>, vector<16x128xf32>,
    return
  }
  func.func @transform_0(%arg0: i32) -> (i32, i32) {
    %c0_i32 = arith.constant 0 : i32
    %c0_i32_0 = arith.constant 0 : i32
    return %arg0, %c0_i32 : i32, i32
  }
  func.func @transform_1(%arg0: i32) -> (i32, i32) {
    %c0_i32 = arith.constant 0 : i32
    %c0_i32_0 = arith.constant 0 : i32
    %c0_i32_1 = arith.constant 0 : i32
    return %c0_i32, %c0_i32_0 : i32, i32
  }
  func.func @transform_2(%arg0: i32) -> (i32, i32) {
    %c0_i32 = arith.constant 0 : i32
    %c0_i32_0 = arith.constant 0 : i32
    %c0_i32_1 = arith.constant 0 : i32
    return %c0_i32, %c0_i32_0 : i32, i32
  }
  func.func @transform_3(%arg0: i32) -> (i32, i32) {
    %c0_i32 = arith.constant 0 : i32
    %c0_i32_0 = arith.constant 0 : i32
    %c0_i32_1 = arith.constant 0 : i32
    return %c0_i32, %c0_i32_0 : i32, i32
  }
  func.func @transform_4(%arg0: i32) -> (i32, i32) {
    %c0_i32 = arith.constant 0 : i32
    %c0_i32_0 = arith.constant 0 : i32
    %c0_i32_1 = arith.constant 0 : i32
    return %c0_i32, %c0_i32_0 : i32, i32
  }
  func.func @transform_5(%arg0: i32) -> (i32, i32) {
    %c0_i32 = arith.constant 0 : i32
    %c0_i32_0 = arith.constant 0 : i32
    return %arg0, %c0_i32 : i32, i32
  }
}

</mosaic_0001>

<llo_original>
// kernel: tpu_custom_call.1
$region0: #{tpu_custom_call.1}
  #allocation0 [shape = 'u32[]', space=smem, size = 0x4, offset = 0x4, fixed_abs, tag = 'smem constant byte address 0x4 - core index']
  #allocation1 [shape = 'u32[72,128]{1,0:T(1,128)}', space=vmem, size = 0x9000, scoped, tag = 'internal scratch']
  %s0 = inlined_call_operand.hbm [shape: bf16[16,10], index: 0, kind: input, shape index: {}]
  %s1 = inlined_call_operand.hbm [shape: bf16[10,30], index: 1, kind: input, shape index: {}]
  %s2 = inlined_call_operand.vmem [shape: f32[1,30], index: 2, kind: input, shape index: {}]
  %s3 = inlined_call_operand.hbm [shape: f32[30,128], index: 3, kind: input, shape index: {}]
  %s4 = inlined_call_operand.vmem [shape: f32[1,128], index: 4, kind: input, shape index: {}]
  %s5 = inlined_call_operand.hbm [shape: f32[16,128], index: 5, kind: output, shape index: {}]
  %s6 = sld [smem:[#allocation0]]
  $region42: #{tpu_custom_call.1} parent=0
    _
  %s8 = ssub.s32 1, %s6
  %s9 = scalar_select 0, %s8, %s6
  $region1: #{tpu_custom_call.1} parent=0
    #allocation2 [shape = 'u8[4096]{0}', space=vmem, size = 0x1000, scoped, tag = 'input window, operand 0, single buffered']
    #allocation3 [shape = 's32[1]{0}', space=sflag, size = 0x4, scoped, tag = 'scoped memory for tpu_custom_call.1']
    #allocation4 [shape = 's32[1]{0}', space=sflag, size = 0x4, scoped, tag = 'scoped memory for tpu_custom_call.1']
    #allocation5 [shape = 'u8[4096]{0}', space=vmem, size = 0x1000, scoped, tag = 'input window, operand 1, single buffered']
    #allocation6 [shape = 's32[1]{0}', space=sflag, size = 0x4, scoped, tag = 'scoped memory for tpu_custom_call.1']
    #allocation7 [shape = 'u8[16384]{0}', space=vmem, size = 0x4000, scoped, tag = 'input window, operand 3, single buffered']
    #allocation8 [shape = 'u8[8192]{0}', space=vmem, size = 0x2000, scoped, tag = 'output window, operand 0, single buffered']
    %10 = vsyncpa [#allocation3], 0
    %11 = vsyncpa [#allocation6], 0
    %12 = vsyncpa [#allocation4], 0
    // Predicated region
    $region2: #{tpu_custom_call.1} parent=1 // pred_check
      _
    $region3: #{tpu_custom_call.1} parent=1 // pred_check_branch
      %14 = sbr.rel (0) target = $region5
    $region4: #{tpu_custom_call.1} parent=1 // pred_region
      %16 = vsyncadd [#allocation3], 0
      %s17 = sshll.u32 %s0, 4
      %s18 = int_to_ptr.hbm [resolvable:$true] %s17
      %s19 = sshll.u32 [#allocation2], 4
      %s20 = int_to_ptr.vmem [resolvable:$true] %s19
      %25 = dma.hbm_to_vmem [thread:$0]  %s18, 128, %s20, [#allocation3], 64, 64, 4
    $region5: #{tpu_custom_call.1} parent=1 // pred_fallthru
      _
    // Predicated region
    $region6: #{tpu_custom_call.1} parent=1 // pred_check
      _
    $region7: #{tpu_custom_call.1} parent=1 // pred_check_branch
      %27 = sbr.rel (0) target = $region9
    $region8: #{tpu_custom_call.1} parent=1 // pred_region
      %29 = vsyncadd [#allocation6], 0
      %s30 = sshll.u32 %s1, 4
      %s31 = int_to_ptr.hbm [resolvable:$true] %s30
      %s32 = sshll.u32 [#allocation5], 4
      %s33 = int_to_ptr.vmem [resolvable:$true] %s32
      %38 = dma.hbm_to_vmem [thread:$0]  %s31, 128, %s33, [#allocation6], 64, 64, 4
    $region9: #{tpu_custom_call.1} parent=1 // pred_fallthru
      _
    // Predicated region
    $region10: #{tpu_custom_call.1} parent=1 // pred_check
      _
    $region11: #{tpu_custom_call.1} parent=1 // pred_check_branch
      %40 = sbr.rel (0) target = $region13
    $region12: #{tpu_custom_call.1} parent=1 // pred_region
      _
    $region13: #{tpu_custom_call.1} parent=1 // pred_fallthru
      _
    // Predicated region
    $region14: #{tpu_custom_call.1} parent=1 // pred_check
      _
    $region15: #{tpu_custom_call.1} parent=1 // pred_check_branch
      %42 = sbr.rel (0) target = $region17
    $region16: #{tpu_custom_call.1} parent=1 // pred_region
      %44 = vsyncadd [#allocation6], 0
      %s45 = sshll.u32 %s3, 4
      %s46 = int_to_ptr.hbm [resolvable:$true] %s45
      %s47 = sshll.u32 [#allocation7], 4
      %s48 = int_to_ptr.vmem [resolvable:$true] %s47
      %53 = dma.hbm_to_vmem [thread:$0]  %s46, 512, %s48, [#allocation6], 128, 128, 8
    $region17: #{tpu_custom_call.1} parent=1 // pred_fallthru
      _
    // Predicated region
    $region18: #{tpu_custom_call.1} parent=1 // pred_check
      _
    $region19: #{tpu_custom_call.1} parent=1 // pred_check_branch
      %55 = sbr.rel (0) target = $region21
    $region20: #{tpu_custom_call.1} parent=1 // pred_region
      _
    $region21: #{tpu_custom_call.1} parent=1 // pred_fallthru
      _
    // Predicated region
    $region22: #{tpu_custom_call.1} parent=1 // pred_check
      _
    $region23: #{tpu_custom_call.1} parent=1 // pred_check_branch
      %57 = sbr.rel (0) target = $region25
    $region24: #{tpu_custom_call.1} parent=1 // pred_region
      %59 = dma.done [#allocation3], 128
    $region25: #{tpu_custom_call.1} parent=1 // pred_fallthru
      _
    // Predicated region
    $region26: #{tpu_custom_call.1} parent=1 // pred_check
      _
    $region27: #{tpu_custom_call.1} parent=1 // pred_check_branch
      %61 = sbr.rel (0) target = $region29
    $region28: #{tpu_custom_call.1} parent=1 // pred_region
      %63 = dma.done [#allocation6], 128
    $region29: #{tpu_custom_call.1} parent=1 // pred_fallthru
      _
    // Predicated region
    $region30: #{tpu_custom_call.1} parent=1 // pred_check
      _
    $region31: #{tpu_custom_call.1} parent=1 // pred_check_branch
      %65 = sbr.rel (0) target = $region33
    $region32: #{tpu_custom_call.1} parent=1 // pred_region
      %67 = dma.done [#allocation6], 512
    $region33: #{tpu_custom_call.1} parent=1 // pred_fallthru
      _
    %v69 = vld [vmem:[#allocation2] sm:$0xf]
    %v70 = vld [vmem:[#allocation2 + $0x4] sm:$0xf]
    %v71 = vld [vmem:[#allocation5] sm:$0xf]
    %v72 = vld [vmem:[#allocation5 + $0x4] sm:$0x1]
    %v73 = vld [vmem:[%s2] sm:$0x1]
    %v75 = vperm.slane %v73, 0
    %v79 = vunpack.c.l.b16 %v69
    %v80 = vunpack.c.l.b16 %v70
    %v81 = vpack.c.b16 %v80, %v79
    %v84 = vunpack.c.l.b16 %v71
    %v85 = vunpack.c.l.b16 %v72
    %v86 = vpack.c.b16 %v85, %v84
    %vm87 = vcmask 80896
    %v89 = vsel %vm87, %v81, 0
    %vm91 = vcmask 1044480
    %v93 = vsel %vm91, %v86, 0
    %95 = vmatpush.bf16.msra.mxu0 0
    %96 = vmatpush.bf16.msra.mxu0 0
    %97 = vmatpush.bf16.msra.mxu0 0
    %98 = vmatpush.bf16.msra.mxu0 0
    %99 = vmatpush.bf16.msra.mxu0 0
    %100 = vmatpush.bf16.msra.mxu0 0
    %101 = vmatpush.bf16.msra.mxu0 0
    %102 = vmatpush.bf16.msra.mxu0 %v93
    %103 = vmatmul.bf16.gmra.mxu0 %v89
    %v104 = vpop.f32.mrf.mxu0
    %v105 = vadd.f32 %v75, %v104
    %v106 = vpop.f32.mrf.mxu0
    %v107 = vadd.f32 %v75, %v106
    %108 = vdwg.mxu0
    %v109 = vmax.f32 %v105, 0.0
    %v110 = vmax.f32 %v107, 0.0
    %v111 = vld [vmem:[#allocation7] sm:$0xff]
    %v112 = vld [vmem:[#allocation7 + $0x8] sm:$0xff]
    %v113 = vld [vmem:[#allocation7 + $0x10] sm:$0xff]
    %v114 = vld [vmem:[#allocation7 + $0x18] sm:$0x3f]
    %v115 = vld [vmem:[%s4] sm:$0x1]
    %v117 = vperm.slane %v115, 0
    %vm119 = vcmask 244736
    %v121 = vsel %vm119, %v109, 0
    %v124 = vsel %vm119, %v110, 0
    %vm126 = vcmask 1045504
    %v128 = vsel %vm126, %v114, 0
    %130 = vmatpush.msra.mxu0 0.0
    %131 = vmatpush.msra.mxu0 0.0
    %132 = vmatpush.msra.mxu0 0.0
    %133 = vmatpush.msra.mxu0 0.0
    %134 = vmatpush.msra.mxu0 0.0
    %135 = vmatpush.msra.mxu0 0.0
    %136 = vmatpush.msra.mxu0 0.0
    %137 = vmatpush.msra.mxu0 0.0
    %138 = vmatpush.msra.mxu0 0.0
    %139 = vmatpush.msra.mxu0 0.0
    %140 = vmatpush.msra.mxu0 0.0
    %141 = vmatpush.msra.mxu0 0.0
    %142 = vmatpush.msra.mxu0 %v128
    %143 = vmatpush.msra.mxu0 %v113
    %144 = vmatpush.msra.mxu0 %v112
    %145 = vmatpush.msra.mxu0 %v111
    %146 = vmatmul.f32.gmra.mxu0 %v121
    %v147 = vpop.f32.mrf.mxu0
    %v148 = vadd.f32 %v117, %v147
    %149 = vmatmul.f32.gmra.mxu0 %v124
    %v150 = vpop.f32.mrf.mxu0
    %v151 = vadd.f32 %v117, %v150
    %152 = vdwg.mxu0
    %153 = vst [vmem:[#allocation8] sm:$0xff] %v148
    %154 = vst [vmem:[#allocation8 + $0x8] sm:$0xff] %v151
    // Predicated region
    $region34: #{tpu_custom_call.1} parent=1 // pred_check
      _
    $region35: #{tpu_custom_call.1} parent=1 // pred_check_branch
      %156 = sbr.rel (0) target = $region37
    $region36: #{tpu_custom_call.1} parent=1 // pred_region
      %158 = vsyncadd [#allocation4], 0
      %s159 = sshll.u32 [#allocation8], 4
      %s160 = int_to_ptr.vmem [resolvable:$true] %s159
      %s161 = sshll.u32 %s5, 4
      %s162 = int_to_ptr.hbm [resolvable:$true] %s161
      %167 = dma.vmem_to_hbm [thread:$0]  %s160, 256, %s162, [#allocation4], 128, 128, 8
    $region37: #{tpu_custom_call.1} parent=1 // pred_fallthru
      _
    // Predicated region
    $region38: #{tpu_custom_call.1} parent=1 // pred_check
      _
    $region39: #{tpu_custom_call.1} parent=1 // pred_check_branch
      %169 = sbr.rel (0) target = $region41
    $region40: #{tpu_custom_call.1} parent=1 // pred_region
      %171 = dma.done [#allocation4], 256
    $region41: #{tpu_custom_call.1} parent=1 // pred_fallthru
      _
    %172 = vsyncpa [#allocation3], 1
    %173 = vsyncpa [#allocation6], 1
    %174 = vsyncpa [#allocation4], 1

</llo_original>
